<compile_context>
chip_gen: v7x
topology: tpu7x:2x2x1
jax: 0.10.0
libtpu: 0.0.40
codegen_flags: <defaults>
</compile_context>

<pallas_src>
import functools

import jax
import jax.numpy as jnp
from jax.experimental import pallas as pl
from jax.experimental.pallas import tpu as pltpu

_LANE = 128
_ROW_MULT = 32          # multiple of the min sublane tile for f32(8)/bf16(16)/int8(32)
_MAX_TILE_ROWS = 4096   # (4096, 128) f32 = 2 MiB per buffer
_TARGET_GRID = 8        # aim for >= 8 grid steps (pipelining + v7x megacore sharding)
_VMEM_LIMIT = 32 * 1024 * 1024


def _round_up(x, m):
    return -(-x // m) * m


def _pick_tile_rows(rows):
    """Largest row tile <= _MAX_TILE_ROWS that still leaves several grid steps."""
    if rows <= _ROW_MULT:
        return rows  # block == full array dim: always a legal block shape
    return min(_MAX_TILE_ROWS, _round_up(pl.cdiv(rows, _TARGET_GRID), _ROW_MULT))


def _flatten_lane(x, n, n_pad, rows):
    """Flatten to a lane-dense (rows, 128) slab, padding only to a lane multiple."""
    flat = x.reshape(-1)
    if n_pad != n:
        flat = jnp.pad(flat, (0, n_pad - n))
    return flat.reshape(rows, _LANE)


# ---------------------------------------------------------------------------
# Single-step kernel (exact module forward)
# ---------------------------------------------------------------------------
def _rif_kernel(g_ref, v_ref, dv_ref, spike_ref, v_out_ref, *, v_threshold, v_reset):
    # g_ref: SMEM (1,) f32 ; other refs: VMEM (TR, 128) in the stream dtype.
    w = g_ref[0].astype(jnp.float32)
    v = v_ref[...].astype(jnp.float32)
    dv = dv_ref[...].astype(jnp.float32)

    v1 = v + (v - v_reset) * w + dv                 # subthreshold dynamics
    fired = v1 >= v_threshold                       # heaviside (>= 0 fires)
    spike_ref[...] = fired.astype(spike_ref.dtype)
    v_out_ref[...] = jnp.where(fired, jnp.float32(v_reset), v1).astype(v_out_ref.dtype)


@functools.partial(
    jax.jit, static_argnames=("v_threshold", "v_reset"), donate_argnames=("v",)
)
def rif_node_forward(dv, v, g, *, v_threshold=1.0, v_reset=0.0):
    """One forward step of RIFNode.

    dv: input voltage increment, any shape (e.g. NCHW), f32 or bf16.
    v : membrane potential state, same shape/dtype as dv.  CONSUMED (donated).
    g : self-connection weight parameter, shape (1,), f32 (amplitude=None case).

    Returns (spike, v_new), both with dv's shape and dtype.
    """
    orig_shape = dv.shape
    dtype = dv.dtype
    n = dv.size

    n_pad = _round_up(n, _LANE)
    rows = n_pad // _LANE
    dv_flat = _flatten_lane(dv, n, n_pad, rows)
    v_flat = _flatten_lane(v, n, n_pad, rows)

    tr = _pick_tile_rows(rows)
    grid = (pl.cdiv(rows, tr),)
    itemsize = jnp.dtype(dtype).itemsize

    kernel = functools.partial(
        _rif_kernel, v_threshold=float(v_threshold), v_reset=float(v_reset)
    )

    spike_flat, v_new_flat = pl.pallas_call(
        kernel,
        out_shape=(
            jax.ShapeDtypeStruct((rows, _LANE), dtype),
            jax.ShapeDtypeStruct((rows, _LANE), dtype),
        ),
        grid=grid,
        in_specs=[
            pl.BlockSpec(memory_space=pltpu.SMEM),           # g (scalar param)
            pl.BlockSpec((tr, _LANE), lambda i: (i, 0)),      # v state
            pl.BlockSpec((tr, _LANE), lambda i: (i, 0)),      # dv input
        ],
        out_specs=(
            pl.BlockSpec((tr, _LANE), lambda i: (i, 0)),      # spike
            pl.BlockSpec((tr, _LANE), lambda i: (i, 0)),      # v_new
        ),
        # Membrane-state buffer alias (backed by donate_argnames on the jit).
        input_output_aliases={1: 1},
        cost_estimate=pl.CostEstimate(
            flops=5 * n, transcendentals=0, bytes_accessed=4 * n * itemsize
        ),
        compiler_params=pltpu.CompilerParams(
            dimension_semantics=("parallel",),
            vmem_limit_bytes=_VMEM_LIMIT,
        ),
    )(g, v_flat, dv_flat)

    if n_pad == n:
        spike = spike_flat.reshape(orig_shape)
        v_new = v_new_flat.reshape(orig_shape)
    else:
        spike = spike_flat.reshape(-1)[:n].reshape(orig_shape)
        v_new = v_new_flat.reshape(-1)[:n].reshape(orig_shape)
    return spike, v_new


# ---------------------------------------------------------------------------
# Fused multi-timestep kernel: v resident in VMEM scratch across T steps
# ---------------------------------------------------------------------------
def _rif_seq_kernel(
    g_ref, v_in_ref, dv_ref, spike_ref, v_out_ref, v_scr, *, v_threshold, v_reset
):
    t = pl.program_id(1)

    @pl.when(t == 0)
    def _():
        v_scr[...] = v_in_ref[...].astype(jnp.float32)

    w = g_ref[0].astype(jnp.float32)
    v = v_scr[...]
    dv = dv_ref[...].astype(jnp.float32)

    v1 = v + (v - v_reset) * w + dv
    fired = v1 >= v_threshold
    spike_ref[...] = fired.astype(spike_ref.dtype)
    v_new = jnp.where(fired, jnp.float32(v_reset), v1)
    v_scr[...] = v_new
    # Output block index is constant over t, so HBM writeback only happens after
    # the last timestep of this row tile.
    v_out_ref[...] = v_new.astype(v_out_ref.dtype)


@functools.partial(
    jax.jit, static_argnames=("v_threshold", "v_reset"), donate_argnames=("v",)
)
def rif_node_forward_sequence(dv_seq, v, g, *, v_threshold=1.0, v_reset=0.0):
    """T fused RIFNode steps: dv_seq is (T, *state_shape); v is CONSUMED (donated).

    Equivalent to calling rif_node_forward T times with the state threaded through,
    but the membrane potential stays resident in VMEM (one HBM read+write of v per
    row tile instead of per timestep).  Returns (spikes (T, *state_shape), v_final).
    """
    T = dv_seq.shape[0]
    state_shape = dv_seq.shape[1:]
    dtype = dv_seq.dtype
    n = v.size

    n_pad = _round_up(n, _LANE)
    rows = n_pad // _LANE
    v_flat = _flatten_lane(v, n, n_pad, rows)

    dv_flat = dv_seq.reshape(T, -1)
    if n_pad != n:
        dv_flat = jnp.pad(dv_flat, ((0, 0), (0, n_pad - n)))
    dv_flat = dv_flat.reshape(T, rows, _LANE)

    tr = _pick_tile_rows(rows)
    grid = (pl.cdiv(rows, tr), T)          # time innermost: state carried in scratch
    itemsize = jnp.dtype(dtype).itemsize

    kernel = functools.partial(
        _rif_seq_kernel, v_threshold=float(v_threshold), v_reset=float(v_reset)
    )

    spike_flat, v_new_flat = pl.pallas_call(
        kernel,
        out_shape=(
            jax.ShapeDtypeStruct((T, rows, _LANE), dtype),
            jax.ShapeDtypeStruct((rows, _LANE), dtype),
        ),
        grid=grid,
        in_specs=[
            pl.BlockSpec(memory_space=pltpu.SMEM),                    # g
            pl.BlockSpec((tr, _LANE), lambda i, t: (i, 0)),            # v0 (read at t==0)
            pl.BlockSpec((None, tr, _LANE), lambda i, t: (t, i, 0)),   # dv[t]
        ],
        out_specs=(
            pl.BlockSpec((None, tr, _LANE), lambda i, t: (t, i, 0)),   # spike[t]
            pl.BlockSpec((tr, _LANE), lambda i, t: (i, 0)),            # v_final
        ),
        scratch_shapes=[pltpu.VMEM((tr, _LANE), jnp.float32)],         # resident v
        input_output_aliases={1: 1},
        cost_estimate=pl.CostEstimate(
            flops=5 * n * T,
            transcendentals=0,
            bytes_accessed=itemsize * (2 * n * T + 2 * n),
        ),
        compiler_params=pltpu.CompilerParams(
            dimension_semantics=("parallel", "arbitrary"),
            vmem_limit_bytes=_VMEM_LIMIT,
        ),
    )(g, v_flat, dv_flat)

    if n_pad == n:
        spikes = spike_flat.reshape((T,) + state_shape)
        v_new = v_new_flat.reshape(state_shape)
    else:
        spikes = spike_flat.reshape(T, -1)[:, :n].reshape((T,) + state_shape)
        v_new = v_new_flat.reshape(-1)[:n].reshape(state_shape)
    return spikes, v_new


# ---------------------------------------------------------------------------
# Pure-JAX reference (matches the PyTorch RIFNode forward)
# ---------------------------------------------------------------------------
def rif_node_ref(dv, v, g, *, v_threshold=1.0, v_reset=0.0):
    v1 = v + (v - v_reset) * g[0] + dv
    spike = (v1 >= v_threshold).astype(v1.dtype)
    v_new = v1 * (1.0 - spike) + v_reset * spike
    return spike, v_new


if __name__ == "__main__":
    key = jax.random.PRNGKey(0)

    # Module hyperparameters (deterministic, matching RIFNode.__init__ defaults)
    init_w = -0.001
    v_threshold = 1.0
    v_reset = 0.0
    g = jnp.array([init_w], dtype=jnp.float32)  # nn.Parameter(torch.tensor([init_w]))

    # NCHW voltage increments for T timesteps; initial state v = v_reset everywhere.
    x_shape = (2, 4, 16, 16)
    T = 8
    dv_seq = jax.random.normal(key, (T,) + x_shape, dtype=jnp.float32) * 2.0

    def make_v0():
        return jnp.full(x_shape, v_reset, dtype=jnp.float32)

    # Pure-JAX reference over T steps (computed first: the Pallas paths donate v).
    v_ref = make_v0()
    ref_spikes = []
    for t in range(T):
        s, v_ref = rif_node_ref(dv_seq[t], v_ref, g,
                                v_threshold=v_threshold, v_reset=v_reset)
        ref_spikes.append(s)
    ref_spikes = jnp.stack(ref_spikes)

    # (a) Single-step kernel, state threaded across T calls (module forward semantics).
    v = make_v0()
    step_spikes = []
    for t in range(T):
        s, v = rif_node_forward(dv_seq[t], v, g,
                                v_threshold=v_threshold, v_reset=v_reset)
        step_spikes.append(s)
    step_spikes = jnp.stack(step_spikes)
    v_step_final = v

    # (b) Fused multi-timestep kernel (v resident in VMEM scratch).
    seq_spikes, v_seq_final = rif_node_forward_sequence(
        dv_seq, make_v0(), g, v_threshold=v_threshold, v_reset=v_reset)

    jax.block_until_ready((step_spikes, v_step_final, seq_spikes, v_seq_final))

    assert step_spikes.shape == (T,) + x_shape
    assert seq_spikes.shape == (T,) + x_shape
    assert jnp.array_equal(step_spikes, ref_spikes), "single-step spikes mismatch"
    assert jnp.allclose(v_step_final, v_ref, atol=1e-5), "single-step v mismatch"
    assert jnp.array_equal(seq_spikes, ref_spikes), "fused-sequence spikes mismatch"
    assert jnp.allclose(v_seq_final, v_ref, atol=1e-5), "fused-sequence v mismatch"

    print("KERNEL_OK")
</pallas_src>

<mosaic_0001>
module attributes {stable_mosaic.version = 11 : i64} {
  func.func @_rif_kernel(%arg0: i32, %arg1: memref<1xf32, #tpu.memory_space<smem>>, %arg2: memref<16x128xf32, #tpu.memory_space<vmem>>, %arg3: memref<16x128xf32, #tpu.memory_space<vmem>>, %arg4: memref<16x128xf32, #tpu.memory_space<vmem>>, %arg5: memref<16x128xf32, #tpu.memory_space<vmem>>) attributes {dimension_semantics = [#tpu.dimension_semantics<parallel>], iteration_bounds = array<i64: 1>, scalar_prefetch = 0 : i64, scratch_operands = 0 : i64, tpu.core_type = #tpu.core_type<tc>, window_params = [{transform_indices = @transform_0, window_bounds = array<i64: 1>}, {transform_indices = @transform_1, window_bounds = array<i64: 16, 128>}, {transform_indices = @transform_2, window_bounds = array<i64: 16, 128>}, {transform_indices = @transform_3, window_bounds = array<i64: 16, 128>}, {transform_indices = @transform_4, window_bounds = array<i64: 16, 128>}]} {
    %c0 = arith.constant 0 : index
    %0 = memref.load %arg1[%c0] : memref<1xf32, #tpu.memory_space<smem>>
    %c0_0 = arith.constant 0 : index
    %c0_1 = arith.constant 0 : index
    %1 = vector.load %arg2[%c0_0, %c0_1] : memref<16x128xf32, #tpu.memory_space<vmem>>, vector<16x128xf32>
    %c0_2 = arith.constant 0 : index
    %c0_3 = arith.constant 0 : index
    %2 = vector.load %arg3[%c0_2, %c0_3] : memref<16x128xf32, #tpu.memory_space<vmem>>, vector<16x128xf32>
    %cst = arith.constant 0.000000e+00 : f32
    %3 = vector.broadcast %cst : f32 to vector<16x128xf32>
    %4 = arith.subf %1, %3 : vector<16x128xf32>
    %5 = vector.broadcast %0 : f32 to vector<16x128xf32>
    %6 = arith.mulf %4, %5 : vector<16x128xf32>
    %7 = arith.addf %1, %6 : vector<16x128xf32>
    %8 = arith.addf %7, %2 : vector<16x128xf32>
    %cst_4 = arith.constant 1.000000e+00 : f32
    %9 = vector.broadcast %cst_4 : f32 to vector<16x128xf32>
    %10 = arith.cmpf oge, %8, %9 : vector<16x128xf32>
    %11 = arith.extui %10 : vector<16x128xi1> to vector<16x128xi32>
    %12 = arith.sitofp %11 : vector<16x128xi32> to vector<16x128xf32>
    %c0_5 = arith.constant 0 : index
    %c0_6 = arith.constant 0 : index
    %13 = vector.load %arg4[%c0_5, %c0_6] : memref<16x128xf32, #tpu.memory_space<vmem>>, vector<16x128xf32>
    tpu.vector_store %arg4[%c0_5, %c0_6], %12 {strides = array<i32>} : memref<16x128xf32, #tpu.memory_space<vmem>>, vector<16x128xf32>,
    %cst_7 = arith.constant 0.000000e+00 : f32
    %14 = vector.broadcast %cst_7 : f32 to vector<16x128xf32>
    %15 = arith.select %10, %14, %8 : vector<16x128xi1>, vector<16x128xf32>
    %c0_8 = arith.constant 0 : index
    %c0_9 = arith.constant 0 : index
    %16 = vector.load %arg5[%c0_8, %c0_9] : memref<16x128xf32, #tpu.memory_space<vmem>>, vector<16x128xf32>
    tpu.vector_store %arg5[%c0_8, %c0_9], %15 {strides = array<i32>} : memref<16x128xf32, #tpu.memory_space<vmem>>, vector<16x128xf32>,
    return
  }
  func.func @transform_0(%arg0: i32) -> i32 {
    %c0_i32 = arith.constant 0 : i32
    %c0_i32_0 = arith.constant 0 : i32
    return %c0_i32 : i32
  }
  func.func @transform_1(%arg0: i32) -> (i32, i32) {
    %c0_i32 = arith.constant 0 : i32
    %c0_i32_0 = arith.constant 0 : i32
    return %arg0, %c0_i32 : i32, i32
  }
  func.func @transform_2(%arg0: i32) -> (i32, i32) {
    %c0_i32 = arith.constant 0 : i32
    %c0_i32_0 = arith.constant 0 : i32
    return %arg0, %c0_i32 : i32, i32
  }
  func.func @transform_3(%arg0: i32) -> (i32, i32) {
    %c0_i32 = arith.constant 0 : i32
    %c0_i32_0 = arith.constant 0 : i32
    return %arg0, %c0_i32 : i32, i32
  }
  func.func @transform_4(%arg0: i32) -> (i32, i32) {
    %c0_i32 = arith.constant 0 : i32
    %c0_i32_0 = arith.constant 0 : i32
    return %arg0, %c0_i32 : i32, i32
  }
}

</mosaic_0001>

<llo_original>
// kernel: rif_node_forward.1
$region0: #{rif_node_forward.1}
  #allocation0 [shape = 'u32[]', space=smem, size = 0x4, offset = 0x4, fixed_abs, tag = 'smem constant byte address 0x4 - core index']
  #allocation1 [shape = 'u32[144,128]{1,0:T(1,128)}', space=vmem, size = 0x12000, scoped, tag = 'internal scratch']
  #allocation2 [shape = 'f32[1]{0:T(128)S(6)}', space=smem, size = 0x200, scoped, tag = 'scoped memory for rif_node_forward.1']
  %s0 = inlined_call_operand.<no memory space> [shape: f32[1], index: 0, kind: input, shape index: {}]
  %s1 = inlined_call_operand.vmem [shape: f32[16,128], index: 1, kind: input, shape index: {}, may-alias: {1,4}]
  %s2 = inlined_call_operand.vmem [shape: f32[16,128], index: 2, kind: input, shape index: {}]
  %s3 = inlined_call_operand.vmem [shape: f32[16,128], index: 3, kind: output, shape index: {0}]
  %s4 = inlined_call_operand.vmem [shape: f32[16,128], index: 4, kind: output, shape index: {1}, may-alias: {1,4}]
  %5 = xla_tuple %s3, %s4
  %s6 = sld [smem:[#allocation0]]
  $region30: #{rif_node_forward.1} parent=0
    _
  %s8 = ssub.s32 1, %s6
  %s9 = scalar_select 0, %s8, %s6
  %10 = sst [smem:[#allocation2]] %s0
  // Predicated region
  $region2: #{rif_node_forward.1} parent=0 // pred_check
    _
  $region3: #{rif_node_forward.1} parent=0 // pred_check_branch
    %12 = sbr.rel (0) target = $region5
  $region4: #{rif_node_forward.1} parent=0 // pred_region
    _
  $region5: #{rif_node_forward.1} parent=0 // pred_fallthru
    _
  // Predicated region
  $region6: #{rif_node_forward.1} parent=0 // pred_check
    _
  $region7: #{rif_node_forward.1} parent=0 // pred_check_branch
    %14 = sbr.rel (0) target = $region9
  $region8: #{rif_node_forward.1} parent=0 // pred_region
    _
  $region9: #{rif_node_forward.1} parent=0 // pred_fallthru
    _
  // Predicated region
  $region10: #{rif_node_forward.1} parent=0 // pred_check
    _
  $region11: #{rif_node_forward.1} parent=0 // pred_check_branch
    %16 = sbr.rel (0) target = $region13
  $region12: #{rif_node_forward.1} parent=0 // pred_region
    _
  $region13: #{rif_node_forward.1} parent=0 // pred_fallthru
    _
  %s17 = sld [smem:[#allocation2]]
  %v18 = vld [vmem:[%s1] sm:$0xff]
  %v19 = vld [vmem:[%s1 + $0x8] sm:$0xff]
  %v20 = vld [vmem:[%s2] sm:$0xff]
  %v21 = vld [vmem:[%s2 + $0x8] sm:$0xff]
  %v22 = vstv %s17
  %v23 = vmul.f32 %v18, %v22
  %v24 = vmul.f32 %v19, %v22
  %v25 = vadd.f32 %v18, %v23
  %v26 = vadd.f32 %v19, %v24
  %v27 = vadd.f32 %v25, %v20
  %v28 = vadd.f32 %v26, %v21
  %vm29 = vcmp.ge.f32.partialorder %v27, 1.0
  %vm30 = vcmp.ge.f32.partialorder %v28, 1.0
  %v31 = vsel %vm29, 1, 0
  %v32 = vsel %vm30, 1, 0
  %v33 = vcvt.s32.f32 %v31
  %v34 = vcvt.s32.f32 %v32
  %35 = vst [vmem:[%s3] sm:$0xff] %v33
  %36 = vst [vmem:[%s3 + $0x8] sm:$0xff] %v34
  %v37 = vsel %vm29, 0.0, %v27
  %v38 = vsel %vm30, 0.0, %v28
  %39 = vst [vmem:[%s4] sm:$0xff] %v37
  %40 = vst [vmem:[%s4 + $0x8] sm:$0xff] %v38
  // Predicated region
  $region14: #{rif_node_forward.1} parent=0 // pred_check
    _
  $region15: #{rif_node_forward.1} parent=0 // pred_check_branch
    %42 = sbr.rel (0) target = $region17
  $region16: #{rif_node_forward.1} parent=0 // pred_region
    _
  $region17: #{rif_node_forward.1} parent=0 // pred_fallthru
    _
  // Predicated region
  $region18: #{rif_node_forward.1} parent=0 // pred_check
    _
  $region19: #{rif_node_forward.1} parent=0 // pred_check_branch
    %44 = sbr.rel (0) target = $region21
  $region20: #{rif_node_forward.1} parent=0 // pred_region
    _
  $region21: #{rif_node_forward.1} parent=0 // pred_fallthru
    _
  // Predicated region
  $region22: #{rif_node_forward.1} parent=0 // pred_check
    _
  $region23: #{rif_node_forward.1} parent=0 // pred_check_branch
    %46 = sbr.rel (0) target = $region25
  $region24: #{rif_node_forward.1} parent=0 // pred_region
    _
  $region25: #{rif_node_forward.1} parent=0 // pred_fallthru
    _
  // Predicated region
  $region26: #{rif_node_forward.1} parent=0 // pred_check
    _
  $region27: #{rif_node_forward.1} parent=0 // pred_check_branch
    %48 = sbr.rel (0) target = $region29
  $region28: #{rif_node_forward.1} parent=0 // pred_region
    _
  $region29: #{rif_node_forward.1} parent=0 // pred_fallthru
    _

</llo_original>
